<compile_context>
chip_gen: v6e
topology: v6e:2x2x1
jax: 0.10.0
libtpu: 0.0.40
codegen_flags: <defaults>
</compile_context>

<pallas_src>
import math

import jax
import jax.numpy as jnp
from jax.experimental import pallas as pl
from jax.experimental.pallas import tpu as pltpu

_LANE = 128
_SUBLANE = 8
_TARGET_STEP_BYTES = 4 * 1024 * 1024     # x-tile + out-tile bytes per grid step
_VMEM_LIMIT_BYTES = 32 * 1024 * 1024     # safe on v5e/v6e (128 MiB) and v7x (64 MiB)


def _round_up(x, m):
    return ((x + m - 1) // m) * m


def _pick_fold(rows, d, e, max_fold=128):
    """Smallest f dividing `rows` with f*d >= 128 and f*e >= 128 (lane-dense
    x and out blocks).  Falls back to the best available divisor, else 1."""
    if (d >= _LANE and e >= _LANE) or rows <= 1:
        return 1
    best, best_score = 1, min(d, e)
    for f in range(2, min(rows, max_fold) + 1):
        if rows % f:
            continue
        if f * d >= _LANE and f * e >= _LANE:
            return f
        score = min(f * d, f * e)
        if score > best_score:
            best, best_score = f, score
    return best


def _pick_row_tile(rows_f, k_f, e_f, itemsize):
    """Row tile (in folded rows): multiple of 8, sized so each grid step moves
    ~_TARGET_STEP_BYTES of x+out, never padded in the wrapper (ragged tails are
    partial edge blocks)."""
    per_row = (k_f + e_f) * itemsize
    tm = max(_SUBLANE, (_TARGET_STEP_BYTES // per_row) // _SUBLANE * _SUBLANE)
    if tm >= rows_f:
        # Whole array fits in one step; if it is big enough, split in two so
        # the "parallel" row axis can feed both v7x TensorCores.
        if rows_f >= 16 * _SUBLANE:          # >= 128 folded rows
            return _round_up((rows_f + 1) // 2, _SUBLANE)
        return rows_f                         # block == full dim (always legal)
    return tm


def _gemm_kernel(x_ref, w_ref, o_ref):
    # One row tile: (TM, Kf) @ (Kf, Ef) -> (TM, Ef), f32 accumulation on the MXU.
    o_ref[...] = jnp.dot(
        x_ref[...], w_ref[...], preferred_element_type=jnp.float32
    ).astype(o_ref.dtype)


def _linear_rows(xr, w):
    """xr: (R, D), w: (D, E) -> (R, E).   Row-tiled, lane-dense GEMM."""
    R, D = xr.shape
    E = w.shape[1]
    out_dtype = xr.dtype
    itemsize = jnp.dtype(out_dtype).itemsize

    # Lane-density fold: (R, D) -> (R/f, f*D) free reshape; W -> kron(I_f, W).
    f = _pick_fold(R, D, E)
    if f > 1:
        x_f = xr.reshape(R // f, f * D)
        w_f = jnp.kron(jnp.eye(f, dtype=w.dtype), w)      # (f*D, f*E), tiny
    else:
        x_f, w_f = xr, w
    Rf, Kf = x_f.shape
    Ef = w_f.shape[1]

    tm = _pick_row_tile(Rf, Kf, Ef, itemsize)
    grid = (pl.cdiv(Rf, tm),)

    cost = pl.CostEstimate(
        flops=2 * Rf * Kf * Ef,
        transcendentals=0,
        bytes_accessed=(Rf * Kf + Kf * Ef + Rf * Ef) * itemsize,
    )

    out_f = pl.pallas_call(
        _gemm_kernel,
        out_shape=jax.ShapeDtypeStruct((Rf, Ef), out_dtype),
        grid=grid,
        in_specs=[
            pl.BlockSpec((tm, Kf), lambda i: (i, 0)),     # streamed x row tile
            pl.BlockSpec((Kf, Ef), lambda i: (0, 0)),     # weight: VMEM-resident
        ],
        out_specs=pl.BlockSpec((tm, Ef), lambda i: (i, 0)),
        compiler_params=pltpu.CompilerParams(
            dimension_semantics=("parallel",),
            vmem_limit_bytes=_VMEM_LIMIT_BYTES,
        ),
        cost_estimate=cost,
    )(x_f, w_f)

    return out_f.reshape(R, E) if f > 1 else out_f


def linear_se3_forward(x_dict, weights):
    """Pallas implementation of LinearSE3.forward.

    x_dict:  {degree: (B, N, dim_in, M)}  with M = 2*degree + 1
    weights: {degree: (dim_in, dim_out)}
    returns: {degree: (B, N, dim_out, M)}
    """
    out = {}
    for degree, w in weights.items():
        x = x_dict[degree]                                # (B, N, D, M)
        B, N, D, M = x.shape
        E = w.shape[1]
        if M == 1:
            # Degree-0 fast path: (B, N, D, 1) -> (B*N, D) is a free view.
            yr = _linear_rows(x.reshape(B * N, D), w)     # (B*N, E)
            out[degree] = yr.reshape(B, N, E, 1)
        else:
            # TODO(synk): degree>0 (M=3,5,...) still pays two wrapper-side
            # transposes (HBM round trips); LinearSE3 only ever instantiates
            # degree '0', so this path is never hit in practice.
            xr = jnp.transpose(x, (0, 1, 3, 2)).reshape(B * N * M, D)
            yr = _linear_rows(xr, w)                      # (B*N*M, E)
            out[degree] = jnp.transpose(yr.reshape(B, N, M, E), (0, 1, 3, 2))
    return out


def init_linear_se3_params(key, dim_in, dim_out):
    # Matches nn.Parameter(torch.randn(dim_in, dim_out) / sqrt(dim_in))
    w = jax.random.normal(key, (dim_in, dim_out), dtype=jnp.float32) / math.sqrt(dim_in)
    return {"0": w}


if __name__ == "__main__":
    key = jax.random.PRNGKey(0)
    k_w, k_x, k_w2, k_x2 = jax.random.split(key, 4)

    # ---- Primary (module-like) shapes: degree-0 features, M = 2*0 + 1 = 1 ----
    B, N, dim_in, dim_out, M = 2, 8, 32, 16, 1
    weights = init_linear_se3_params(k_w, dim_in, dim_out)
    x = {"0": jax.random.normal(k_x, (B, N, dim_in, M), dtype=jnp.float32)}

    out = linear_se3_forward(x, weights)
    out = jax.tree_util.tree_map(jax.block_until_ready, out)
    ref = jnp.einsum("bndm,de->bnem", x["0"], weights["0"])
    assert out["0"].shape == (B, N, dim_out, M), out["0"].shape
    assert jnp.allclose(out["0"], ref, atol=1e-5, rtol=1e-5), "mismatch vs reference"

    # ---- Second check: multi-step grid with a ragged (partial) last row tile ----
    B2, N2, D2, E2 = 2, 300, 64, 32
    w2 = {"0": jax.random.normal(k_w2, (D2, E2), dtype=jnp.float32) / math.sqrt(D2)}
    x2 = {"0": jax.random.normal(k_x2, (B2, N2, D2, 1), dtype=jnp.float32)}
    out2 = linear_se3_forward(x2, w2)
    out2 = jax.tree_util.tree_map(jax.block_until_ready, out2)
    ref2 = jnp.einsum("bndm,de->bnem", x2["0"], w2["0"])
    assert out2["0"].shape == (B2, N2, E2, 1), out2["0"].shape
    assert jnp.allclose(out2["0"], ref2, atol=1e-4, rtol=1e-4), "mismatch vs reference (ragged)"

    print("KERNEL_OK")
</pallas_src>

<mosaic_0001>
module attributes {stable_mosaic.version = 11 : i64} {
  func.func @_gemm_kernel(%arg0: i32, %arg1: memref<2x256xf32, #tpu.memory_space<vmem>>, %arg2: memref<256x128xf32, #tpu.memory_space<vmem>>, %arg3: memref<2x128xf32, #tpu.memory_space<vmem>>) attributes {dimension_semantics = [#tpu.dimension_semantics<parallel>], iteration_bounds = array<i64: 1>, scalar_prefetch = 0 : i64, scratch_operands = 0 : i64, tpu.core_type = #tpu.core_type<tc>, window_params = [{transform_indices = @transform_0, window_bounds = array<i64: 2, 256>}, {pipeline_mode = #tpu.pipeline_mode<synchronous>, transform_indices = @transform_1, window_bounds = array<i64: 256, 128>}, {transform_indices = @transform_2, window_bounds = array<i64: 2, 128>}]} {
    %c0 = arith.constant 0 : index
    %c0_0 = arith.constant 0 : index
    %0 = vector.load %arg1[%c0, %c0_0] : memref<2x256xf32, #tpu.memory_space<vmem>>, vector<2x256xf32>
    %c0_1 = arith.constant 0 : index
    %c0_2 = arith.constant 0 : index
    %1 = vector.load %arg2[%c0_1, %c0_2] : memref<256x128xf32, #tpu.memory_space<vmem>>, vector<256x128xf32>
    %cst = arith.constant dense<0.000000e+00> : vector<2x128xf32>
    %2 = tpu.matmul %0, %1, %cst {dimension_numbers = #tpu.dot_dimension_numbers<[1], [0], [0], [1], [0, 0, 1, 1], [], []>} : vector<2x256xf32>, vector<256x128xf32>, vector<2x128xf32> -> vector<2x128xf32>
    %c0_3 = arith.constant 0 : index
    %c0_4 = arith.constant 0 : index
    %3 = vector.load %arg3[%c0_3, %c0_4] : memref<2x128xf32, #tpu.memory_space<vmem>>, vector<2x128xf32>
    tpu.vector_store %arg3[%c0_3, %c0_4], %2 {strides = array<i32>} : memref<2x128xf32, #tpu.memory_space<vmem>>, vector<2x128xf32>,
    return
  }
  func.func @transform_0(%arg0: i32) -> (i32, i32) {
    %c0_i32 = arith.constant 0 : i32
    %c0_i32_0 = arith.constant 0 : i32
    return %arg0, %c0_i32 : i32, i32
  }
  func.func @transform_1(%arg0: i32) -> (i32, i32) {
    %c0_i32 = arith.constant 0 : i32
    %c0_i32_0 = arith.constant 0 : i32
    %c0_i32_1 = arith.constant 0 : i32
    return %c0_i32, %c0_i32_0 : i32, i32
  }
  func.func @transform_2(%arg0: i32) -> (i32, i32) {
    %c0_i32 = arith.constant 0 : i32
    %c0_i32_0 = arith.constant 0 : i32
    return %arg0, %c0_i32 : i32, i32
  }
}

</mosaic_0001>

<llo_original>
// kernel: tpu_custom_call.1
$region0: #{tpu_custom_call.1}
  #allocation0 [shape = 'u32[]', space=smem, size = 0x4, offset = 0x4, fixed_abs, tag = 'smem constant byte address 0x4 - core index']
  #allocation1 [shape = 'u32[144,128]{1,0:T(1,128)}', space=vmem, size = 0x12000, scoped, tag = 'internal scratch']
  %s0 = inlined_call_operand.hbm [shape: f32[2,256], index: 0, kind: input, shape index: {}]
  %s1 = inlined_call_operand.hbm [shape: f32[256,128], index: 1, kind: input, shape index: {}]
  %s2 = inlined_call_operand.hbm [shape: f32[2,128], index: 2, kind: output, shape index: {}]
  %s3 = sld [smem:[#allocation0]]
  $region26: #{tpu_custom_call.1} parent=0
    _
  %s5 = ssub.s32 1, %s3
  %s6 = scalar_select 0, %s5, %s3
  $region1: #{tpu_custom_call.1} parent=0
    #allocation2 [shape = 'u8[2048]{0}', space=vmem, size = 0x800, scoped, tag = 'input window, operand 0, single buffered']
    #allocation3 [shape = 's32[1]{0}', space=sflag, size = 0x4, scoped, tag = 'scoped memory for tpu_custom_call.1']
    #allocation4 [shape = 's32[1]{0}', space=sflag, size = 0x4, scoped, tag = 'scoped memory for tpu_custom_call.1']
    #allocation5 [shape = 'u8[131072]{0}', space=vmem, size = 0x20000, scoped, tag = 'input window, operand 1, single buffered']
    #allocation6 [shape = 's32[1]{0}', space=sflag, size = 0x4, scoped, tag = 'scoped memory for tpu_custom_call.1']
    #allocation7 [shape = 'u8[1024]{0}', space=vmem, size = 0x400, scoped, tag = 'output window, operand 0, single buffered']
    %7 = vsyncpa [#allocation3], 0
    %8 = vsyncpa [#allocation6], 0
    %9 = vsyncpa [#allocation4], 0
    // Predicated region
    $region2: #{tpu_custom_call.1} parent=1 // pred_check
      _
    $region3: #{tpu_custom_call.1} parent=1 // pred_check_branch
      %11 = sbr.rel (0) target = $region5
    $region4: #{tpu_custom_call.1} parent=1 // pred_region
      %s13 = ssub.s32 64, 64
      %14 = vsyncadd [#allocation3], %s13
      %s16 = sshll.u32 [#allocation2], 4
      %s17 = int_to_ptr.vmem [resolvable:$true] %s16
      %19 = dma.hbm_to_vmem [thread:$0]  %s0, 64, %s17, [#allocation3]
    $region5: #{tpu_custom_call.1} parent=1 // pred_fallthru
      _
    // Predicated region
    $region6: #{tpu_custom_call.1} parent=1 // pred_check
      _
    $region7: #{tpu_custom_call.1} parent=1 // pred_check_branch
      %21 = sbr.rel (0) target = $region9
    $region8: #{tpu_custom_call.1} parent=1 // pred_region
      %s23 = ssub.s32 4096, 4096
      %24 = vsyncadd [#allocation6], %s23
      %s25 = sshll.u32 [#allocation5], 4
      %s26 = int_to_ptr.vmem [resolvable:$true] %s25
      %31 = dma.hbm_to_vmem [thread:$0]  %s1, 4096, %s26, [#allocation6], 128, 128, 8
    $region9: #{tpu_custom_call.1} parent=1 // pred_fallthru
      _
    // Predicated region
    $region10: #{tpu_custom_call.1} parent=1 // pred_check
      _
    $region11: #{tpu_custom_call.1} parent=1 // pred_check_branch
      %33 = sbr.rel (0) target = $region13
    $region12: #{tpu_custom_call.1} parent=1 // pred_region
      %34 = dma.done [#allocation3], 64
    $region13: #{tpu_custom_call.1} parent=1 // pred_fallthru
      _
    // Predicated region
    $region14: #{tpu_custom_call.1} parent=1 // pred_check
      _
    $region15: #{tpu_custom_call.1} parent=1 // pred_check_branch
      %36 = sbr.rel (0) target = $region17
    $region16: #{tpu_custom_call.1} parent=1 // pred_region
      %37 = dma.done [#allocation6], 4096
    $region17: #{tpu_custom_call.1} parent=1 // pred_fallthru
      _
    %v38 = vld [vmem:[#allocation2] sm:$0xf]
    %v39 = vld [vmem:[#allocation5] sm:$0xff]
    %v40 = vld [vmem:[#allocation5 + $0x8] sm:$0xff]
    %v41 = vld [vmem:[#allocation5 + $0x10] sm:$0xff]
    %v42 = vld [vmem:[#allocation5 + $0x18] sm:$0xff]
    %v43 = vld [vmem:[#allocation5 + $0x20] sm:$0xff]
    %v44 = vld [vmem:[#allocation5 + $0x28] sm:$0xff]
    %v45 = vld [vmem:[#allocation5 + $0x30] sm:$0xff]
    %v46 = vld [vmem:[#allocation5 + $0x38] sm:$0xff]
    %v47 = vld [vmem:[#allocation5 + $0x40] sm:$0xff]
    %v48 = vld [vmem:[#allocation5 + $0x48] sm:$0xff]
    %v49 = vld [vmem:[#allocation5 + $0x50] sm:$0xff]
    %v50 = vld [vmem:[#allocation5 + $0x58] sm:$0xff]
    %v51 = vld [vmem:[#allocation5 + $0x60] sm:$0xff]
    %v52 = vld [vmem:[#allocation5 + $0x68] sm:$0xff]
    %v53 = vld [vmem:[#allocation5 + $0x70] sm:$0xff]
    %v54 = vld [vmem:[#allocation5 + $0x78] sm:$0xff]
    %v55 = vld [vmem:[#allocation5 + $0x80] sm:$0xff]
    %v56 = vld [vmem:[#allocation5 + $0x88] sm:$0xff]
    %v57 = vld [vmem:[#allocation5 + $0x90] sm:$0xff]
    %v58 = vld [vmem:[#allocation5 + $0x98] sm:$0xff]
    %v59 = vld [vmem:[#allocation5 + $0xa0] sm:$0xff]
    %v60 = vld [vmem:[#allocation5 + $0xa8] sm:$0xff]
    %v61 = vld [vmem:[#allocation5 + $0xb0] sm:$0xff]
    %v62 = vld [vmem:[#allocation5 + $0xb8] sm:$0xff]
    %v63 = vld [vmem:[#allocation5 + $0xc0] sm:$0xff]
    %v64 = vld [vmem:[#allocation5 + $0xc8] sm:$0xff]
    %v65 = vld [vmem:[#allocation5 + $0xd0] sm:$0xff]
    %v66 = vld [vmem:[#allocation5 + $0xd8] sm:$0xff]
    %v67 = vld [vmem:[#allocation5 + $0xe0] sm:$0xff]
    %v68 = vld [vmem:[#allocation5 + $0xe8] sm:$0xff]
    %v69 = vld [vmem:[#allocation5 + $0xf0] sm:$0xff]
    %v70 = vld [vmem:[#allocation5 + $0xf8] sm:$0xff]
    %v73 = vunpack.c.l.s4 1983009808
    %v74 = vunpack.c.0.s8 %v73
    %v75 = vlaneseq
    %v76 = vshrl.u32 %v75, 7
    %v77 = vsub.s32 %v74, %v76
    %v78 = vrot.slane %v38, %v77
    %v79 = vcombine.high %v78, %v78
    %82 = vmatprep.subr.mxu0 0.0
    %83 = vmatpush1.msra.mxu0 %v54
    %84 = vmatprep.subr.mxu0 0.0
    %85 = vmatpush1.msra.mxu0 %v53
    %86 = vmatprep.subr.mxu0 0.0
    %87 = vmatpush1.msra.mxu0 %v52
    %88 = vmatprep.subr.mxu0 0.0
    %89 = vmatpush1.msra.mxu0 %v51
    %90 = vmatprep.subr.mxu0 0.0
    %91 = vmatpush1.msra.mxu0 %v50
    %92 = vmatprep.subr.mxu0 0.0
    %93 = vmatpush1.msra.mxu0 %v49
    %94 = vmatprep.subr.mxu0 0.0
    %95 = vmatpush1.msra.mxu0 %v48
    %96 = vmatprep.subr.mxu0 0.0
    %97 = vmatpush1.msra.mxu0 %v47
    %98 = vmatprep.subr.mxu0 0.0
    %99 = vmatpush1.msra.mxu0 %v46
    %100 = vmatprep.subr.mxu0 0.0
    %101 = vmatpush1.msra.mxu0 %v45
    %102 = vmatprep.subr.mxu0 0.0
    %103 = vmatpush1.msra.mxu0 %v44
    %104 = vmatprep.subr.mxu0 0.0
    %105 = vmatpush1.msra.mxu0 %v43
    %106 = vmatprep.subr.mxu0 0.0
    %107 = vmatpush1.msra.mxu0 %v42
    %108 = vmatprep.subr.mxu0 0.0
    %109 = vmatpush1.msra.mxu0 %v41
    %110 = vmatprep.subr.mxu0 0.0
    %111 = vmatpush1.msra.mxu0 %v40
    %112 = vmatprep.subr.mxu0 0.0
    %113 = vmatpush1.msra.mxu0 %v39
    %114 = vmatprep.subr.mxu0 0.0
    %115 = vmatpush2.msra.mxu0 %v70
    %116 = vmatprep.subr.mxu0 0.0
    %117 = vmatpush2.msra.mxu0 %v69
    %118 = vmatprep.subr.mxu0 0.0
    %119 = vmatpush2.msra.mxu0 %v68
    %120 = vmatprep.subr.mxu0 0.0
    %121 = vmatpush2.msra.mxu0 %v67
    %122 = vmatprep.subr.mxu0 0.0
    %123 = vmatpush2.msra.mxu0 %v66
    %124 = vmatprep.subr.mxu0 0.0
    %125 = vmatpush2.msra.mxu0 %v65
    %126 = vmatprep.subr.mxu0 0.0
    %127 = vmatpush2.msra.mxu0 %v64
    %128 = vmatprep.subr.mxu0 0.0
    %129 = vmatpush2.msra.mxu0 %v63
    %130 = vmatprep.subr.mxu0 0.0
    %131 = vmatpush2.msra.mxu0 %v62
    %132 = vmatprep.subr.mxu0 0.0
    %133 = vmatpush2.msra.mxu0 %v61
    %134 = vmatprep.subr.mxu0 0.0
    %135 = vmatpush2.msra.mxu0 %v60
    %136 = vmatprep.subr.mxu0 0.0
    %137 = vmatpush2.msra.mxu0 %v59
    %138 = vmatprep.subr.mxu0 0.0
    %139 = vmatpush2.msra.mxu0 %v58
    %140 = vmatprep.subr.mxu0 0.0
    %141 = vmatpush2.msra.mxu0 %v57
    %142 = vmatprep.subr.mxu0 0.0
    %143 = vmatpush2.msra.mxu0 %v56
    %144 = vmatprep.subr.mxu0 0.0
    %145 = vmatpush2.msra.mxu0 %v55
    %146 = vmatprep.mubr.f32.mxu0 %v79
    %147 = vmatmul.mubr.f32.gmra.mxu0 %v78
    %v148 = vpop.f32.mrf.mxu0
    %v149 = vadd.f32 0.0, %v148
    %v150 = vpop.f32.mrf.mxu0
    %151 = vdwg.mxu0
    %152 = vst [vmem:[#allocation7] sm:$0x3] %v149
    // Predicated region
    $region18: #{tpu_custom_call.1} parent=1 // pred_check
      _
    $region19: #{tpu_custom_call.1} parent=1 // pred_check_branch
      %154 = sbr.rel (0) target = $region21
    $region20: #{tpu_custom_call.1} parent=1 // pred_region
      %s156 = ssub.s32 32, 32
      %157 = vsyncadd [#allocation4], %s156
      %s159 = sshll.u32 [#allocation7], 4
      %s160 = int_to_ptr.vmem [resolvable:$true] %s159
      %162 = dma.vmem_to_hbm [thread:$0]  %s160, 32, %s2, [#allocation4]
    $region21: #{tpu_custom_call.1} parent=1 // pred_fallthru
      _
    // Predicated region
    $region22: #{tpu_custom_call.1} parent=1 // pred_check
      _
    $region23: #{tpu_custom_call.1} parent=1 // pred_check_branch
      %164 = sbr.rel (0) target = $region25
    $region24: #{tpu_custom_call.1} parent=1 // pred_region
      %165 = dma.done [#allocation4], 32
    $region25: #{tpu_custom_call.1} parent=1 // pred_fallthru
      _
    %166 = vsyncpa [#allocation3], 1
    %167 = vsyncpa [#allocation6], 1
    %168 = vsyncpa [#allocation4], 1

</llo_original>
